<compile_context>
chip_gen: v7x
topology: tpu7x:2x2x1
jax: 0.10.0
libtpu: 0.0.40
codegen_flags: <defaults>
</compile_context>

<pallas_src>
import numpy as np
import jax
import jax.numpy as jnp
from jax import lax
from jax.experimental import pallas as pl
from jax.experimental.pallas import tpu as pltpu


# --------------------------------------------------------------------------
# Kernel: one grid step == one full image (all static loads/slices)
# --------------------------------------------------------------------------
def bottleneck_kernel(x_ref, w1_ref, b1_ref, w2_ref, b2_ref, w3_ref, b3_ref,
                      o_ref):
    # x_ref block : (1, H+2, W*Cin)  -- whole zero-halo-padded image
    # o_ref block : (1, H,   W*Cout) -- whole output image (lane-dense)
    H = o_ref.shape[1]
    x_win = x_ref[0].astype(jnp.float32)                 # static full read

    # ---- conv1 (1x1) + folded bn1 + relu: one block-diagonal matmul ----------
    out1 = jnp.dot(x_win, w1_ref[...], preferred_element_type=jnp.float32)
    out1 = jnp.maximum(out1 + b1_ref[...], 0.0)          # (H+2, W*width)

    # Halo rows 0 and H+1 are the 3x3 conv's zero padding; they must contribute
    # zeros, not relu(b1).  Single grid step per image -> keep the mask inline.
    row = lax.broadcasted_iota(jnp.int32, (H + 2, 1), 0)
    out1 = jnp.where(jnp.logical_and(row >= 1, row <= H), out1, 0.0)

    # ---- conv2 (3x3, stride=1, pad=1) + folded bn2 + relu --------------------
    # Banded (block-Toeplitz) weights handle the x-direction taps/padding, so
    # the 3x3 conv is 3 matmuls over static row-shifted windows (one per ky).
    acc = jnp.dot(out1[0:H], w2_ref[0], preferred_element_type=jnp.float32)
    acc = acc + jnp.dot(out1[1:H + 1], w2_ref[1],
                        preferred_element_type=jnp.float32)
    acc = acc + jnp.dot(out1[2:H + 2], w2_ref[2],
                        preferred_element_type=jnp.float32)
    out2 = jnp.maximum(acc + b2_ref[...], 0.0)           # (H, W*width)

    # ---- conv3 (1x1) + folded bn3 + residual + relu --------------------------
    out3 = jnp.dot(out2, w3_ref[...], preferred_element_type=jnp.float32)
    out3 = out3 + b3_ref[...]
    identity = x_win[1:H + 1]                            # Cin == Cout, same packing
    o_ref[0] = jnp.maximum(out3 + identity, 0.0).astype(o_ref.dtype)


# --------------------------------------------------------------------------
# Weight / BN folding and packing (host side, numpy)
# --------------------------------------------------------------------------
def pack_params(w1_t, s1, b1, w2_t, s2, b2, w3_t, s3, b3, W):
    """Fold BN scales into conv weights and pack them for the lane-packed
    (H, W*C) kernel layout.  Conv weights are in PyTorch (O, I, kh, kw)."""
    w1_t, w2_t, w3_t = np.asarray(w1_t), np.asarray(w2_t), np.asarray(w3_t)
    s1, b1 = np.asarray(s1).reshape(-1), np.asarray(b1).reshape(-1)
    s2, b2 = np.asarray(s2).reshape(-1), np.asarray(b2).reshape(-1)
    s3, b3 = np.asarray(s3).reshape(-1), np.asarray(b3).reshape(-1)

    width, cin = w1_t.shape[0], w1_t.shape[1]
    cout = w3_t.shape[0]

    # conv1: block-diagonal (W*Cin, W*width), bn1 scale folded into columns
    w1 = w1_t[:, :, 0, 0].T * s1[None, :]                   # (Cin, width)
    W1 = np.zeros((W * cin, W * width), np.float32)
    for x in range(W):
        W1[x * cin:(x + 1) * cin, x * width:(x + 1) * width] = w1

    # conv2: banded block-Toeplitz (3, W*width, W*width), bn2 folded
    w2 = np.transpose(w2_t, (2, 3, 1, 0)) * s2[None, None, None, :]  # (kh,kw,I,O)
    W2 = np.zeros((3, W * width, W * width), np.float32)
    for kx in range(3):
        dx = kx - 1
        for xo in range(W):
            xi = xo + dx
            if 0 <= xi < W:
                W2[:, xi * width:(xi + 1) * width,
                   xo * width:(xo + 1) * width] = w2[:, kx]

    # conv3: block-diagonal (W*width, W*Cout), bn3 folded
    w3 = w3_t[:, :, 0, 0].T * s3[None, :]                   # (width, Cout)
    W3 = np.zeros((W * width, W * cout), np.float32)
    for x in range(W):
        W3[x * width:(x + 1) * width, x * cout:(x + 1) * cout] = w3

    b1p = np.tile(b1, W).reshape(1, W * width)
    b2p = np.tile(b2, W).reshape(1, W * width)
    b3p = np.tile(b3, W).reshape(1, W * cout)
    return tuple(jnp.asarray(a, jnp.float32)
                 for a in (W1, b1p, W2, b2p, W3, b3p))


# --------------------------------------------------------------------------
# Pallas wrapper (NHWC in / NHWC out; no HBM-level transposes)
# --------------------------------------------------------------------------
def bottleneck_pallas(x_nhwc, params):
    N, H, W, Cin = x_nhwc.shape
    W1, b1p, W2, b2p, W3, b3p = params
    Cout = W3.shape[1] // W

    xp = x_nhwc.reshape(N, H, W * Cin)                  # free lane-packing
    xp = jnp.pad(xp, ((0, 0), (1, 1), (0, 0)))          # zero halo rows (3x3)

    def _full_spec(a):
        nd = a.ndim
        return pl.BlockSpec(a.shape, lambda n, _nd=nd: (0,) * _nd)

    out = pl.pallas_call(
        bottleneck_kernel,
        out_shape=jax.ShapeDtypeStruct((N, H, W * Cout), x_nhwc.dtype),
        grid_spec=pltpu.PrefetchScalarGridSpec(
            num_scalar_prefetch=0,
            grid=(N,),                                  # one step per image
            in_specs=[
                # whole padded image for batch element n
                pl.BlockSpec((1, H + 2, W * Cin), lambda n: (n, 0, 0)),
                # weights/biases: constant block index -> stay VMEM-resident
                _full_spec(W1), _full_spec(b1p),
                _full_spec(W2), _full_spec(b2p),
                _full_spec(W3), _full_spec(b3p),
            ],
            out_specs=pl.BlockSpec((1, H, W * Cout), lambda n: (n, 0, 0)),
        ),
        compiler_params=pltpu.CompilerParams(
            # batch axis is independent -> v7x megacore shards images across
            # its two TensorCores.
            dimension_semantics=("parallel",)),
    )(xp, W1, b1p, W2, b2p, W3, b3p)
    return out.reshape(N, H, W, Cout)


# --------------------------------------------------------------------------
# Reference (pure JAX, NHWC) and test harness
# --------------------------------------------------------------------------
def _bn_fold(key, c, eps=1e-5):
    k1, k2, k3, k4 = jax.random.split(key, 4)
    gamma = 1.0 + 0.1 * jax.random.normal(k1, (c,), jnp.float32)
    beta = 0.1 * jax.random.normal(k2, (c,), jnp.float32)
    mean = 0.1 * jax.random.normal(k3, (c,), jnp.float32)
    var = jnp.abs(jax.random.normal(k4, (c,), jnp.float32)) + 0.5
    scale = gamma / jnp.sqrt(var + eps)
    shift = beta - mean * scale
    return scale, shift


def _reference_nhwc(x, w1_t, s1, b1, w2_t, s2, b2, w3_t, s3, b3):
    dn = ('NHWC', 'OIHW', 'NHWC')
    y = lax.conv_general_dilated(x, w1_t, (1, 1), 'VALID', dimension_numbers=dn)
    y = jnp.maximum(y * s1.reshape(1, 1, 1, -1) + b1.reshape(1, 1, 1, -1), 0.0)
    y = lax.conv_general_dilated(y, w2_t, (1, 1), ((1, 1), (1, 1)),
                                 dimension_numbers=dn)
    y = jnp.maximum(y * s2.reshape(1, 1, 1, -1) + b2.reshape(1, 1, 1, -1), 0.0)
    y = lax.conv_general_dilated(y, w3_t, (1, 1), 'VALID', dimension_numbers=dn)
    y = y * s3.reshape(1, 1, 1, -1) + b3.reshape(1, 1, 1, -1)
    return jnp.maximum(y + x, 0.0)


if __name__ == "__main__":
    # Bottleneck(inplanes=16, planes=4): width = 4, out channels = 16,
    # downsample=None (requires inplanes == planes*4 and stride=1).
    N, H, W = 2, 16, 16
    inplanes, planes = 16, 4
    width = planes                        # base_width=64, groups=1
    cout = planes * 4

    key = jax.random.PRNGKey(0)
    kx, kw1, kw2, kw3, kb1, kb2, kb3 = jax.random.split(key, 7)

    x = jax.random.normal(kx, (N, H, W, inplanes), jnp.float32)   # NHWC

    # conv weights in PyTorch (O, I, kh, kw) layout
    w1_t = 0.1 * jax.random.normal(kw1, (width, inplanes, 1, 1), jnp.float32)
    w2_t = 0.1 * jax.random.normal(kw2, (width, width, 3, 3), jnp.float32)
    w3_t = 0.1 * jax.random.normal(kw3, (cout, width, 1, 1), jnp.float32)

    # folded inference-mode BatchNorm scale/shift per stage
    s1, b1 = _bn_fold(kb1, width)
    s2, b2 = _bn_fold(kb2, width)
    s3, b3 = _bn_fold(kb3, cout)

    params = pack_params(w1_t, s1, b1, w2_t, s2, b2, w3_t, s3, b3, W)

    out = bottleneck_pallas(x, params)
    out = jax.block_until_ready(out)

    ref = jax.block_until_ready(
        _reference_nhwc(x, w1_t, s1, b1, w2_t, s2, b2, w3_t, s3, b3))
    np.testing.assert_allclose(np.asarray(out), np.asarray(ref),
                               rtol=2e-4, atol=2e-4)

    print("KERNEL_OK")
</pallas_src>

<mosaic_0001>
module attributes {stable_mosaic.version = 11 : i64} {
  func.func @bottleneck_kernel(%arg0: i32, %arg1: memref<1x18x256xf32, #tpu.memory_space<vmem>>, %arg2: memref<256x64xf32, #tpu.memory_space<vmem>>, %arg3: memref<1x64xf32, #tpu.memory_space<vmem>>, %arg4: memref<3x64x64xf32, #tpu.memory_space<vmem>>, %arg5: memref<1x64xf32, #tpu.memory_space<vmem>>, %arg6: memref<64x256xf32, #tpu.memory_space<vmem>>, %arg7: memref<1x256xf32, #tpu.memory_space<vmem>>, %arg8: memref<1x16x256xf32, #tpu.memory_space<vmem>>) attributes {dimension_semantics = [#tpu.dimension_semantics<parallel>], iteration_bounds = array<i64: 2>, scalar_prefetch = 0 : i64, scratch_operands = 0 : i64, tpu.core_type = #tpu.core_type<tc>, window_params = [{transform_indices = @transform_0, window_bounds = array<i64: 1, 18, 256>}, {pipeline_mode = #tpu.pipeline_mode<synchronous>, transform_indices = @transform_1, window_bounds = array<i64: 256, 64>}, {pipeline_mode = #tpu.pipeline_mode<synchronous>, transform_indices = @transform_2, window_bounds = array<i64: 1, 64>}, {pipeline_mode = #tpu.pipeline_mode<synchronous>, transform_indices = @transform_3, window_bounds = array<i64: 3, 64, 64>}, {pipeline_mode = #tpu.pipeline_mode<synchronous>, transform_indices = @transform_4, window_bounds = array<i64: 1, 64>}, {pipeline_mode = #tpu.pipeline_mode<synchronous>, transform_indices = @transform_5, window_bounds = array<i64: 64, 256>}, {pipeline_mode = #tpu.pipeline_mode<synchronous>, transform_indices = @transform_6, window_bounds = array<i64: 1, 256>}, {transform_indices = @transform_7, window_bounds = array<i64: 1, 16, 256>}]} {
    %c0 = arith.constant 0 : index
    %c0_0 = arith.constant 0 : index
    %c0_1 = arith.constant 0 : index
    %0 = vector.load %arg1[%c0, %c0_0, %c0_1] : memref<1x18x256xf32, #tpu.memory_space<vmem>>, vector<1x18x256xf32>
    %1 = vector.shape_cast %0 : vector<1x18x256xf32> to vector<18x256xf32>
    %c0_2 = arith.constant 0 : index
    %c0_3 = arith.constant 0 : index
    %2 = vector.load %arg2[%c0_2, %c0_3] : memref<256x64xf32, #tpu.memory_space<vmem>>, vector<256x64xf32>
    %cst = arith.constant dense<0.000000e+00> : vector<18x64xf32>
    %3 = tpu.matmul %1, %2, %cst {dimension_numbers = #tpu.dot_dimension_numbers<[1], [0], [0], [1], [0, 0, 1, 1], [], []>} : vector<18x256xf32>, vector<256x64xf32>, vector<18x64xf32> -> vector<18x64xf32>
    %c0_4 = arith.constant 0 : index
    %c0_5 = arith.constant 0 : index
    %4 = vector.load %arg3[%c0_4, %c0_5] : memref<1x64xf32, #tpu.memory_space<vmem>>, vector<1x64xf32>
    %5 = vector.broadcast %4 : vector<1x64xf32> to vector<18x64xf32>
    %6 = arith.addf %3, %5 : vector<18x64xf32>
    %cst_6 = arith.constant 0.000000e+00 : f32
    %7 = vector.broadcast %cst_6 : f32 to vector<18x64xf32>
    %8 = arith.maximumf %6, %7 : vector<18x64xf32>
    %9 = tpu.iota {dimensions = array<i32: 0>} : vector<18x1xi32>
    %c1_i32 = arith.constant 1 : i32
    %10 = vector.broadcast %c1_i32 : i32 to vector<18x1xi32>
    %11 = arith.cmpi sge, %9, %10 : vector<18x1xi32>
    %c16_i32 = arith.constant 16 : i32
    %12 = vector.broadcast %c16_i32 : i32 to vector<18x1xi32>
    %13 = arith.cmpi sle, %9, %12 : vector<18x1xi32>
    %14 = arith.andi %11, %13 : vector<18x1xi1>
    %cst_7 = arith.constant 0.000000e+00 : f32
    %15 = vector.shape_cast %14 : vector<18x1xi1> to vector<18x1xi1>
    %16 = vector.broadcast %15 : vector<18x1xi1> to vector<18x64xi1>
    %17 = vector.broadcast %cst_7 : f32 to vector<18x64xf32>
    %18 = arith.select %16, %8, %17 : vector<18x64xi1>, vector<18x64xf32>
    %19 = vector.extract_strided_slice %18 {offsets = [0, 0], sizes = [16, 64], strides = [1, 1]} : vector<18x64xf32> to vector<16x64xf32>
    %c0_8 = arith.constant 0 : index
    %c0_9 = arith.constant 0 : index
    %c0_10 = arith.constant 0 : index
    %20 = vector.load %arg4[%c0_8, %c0_9, %c0_10] : memref<3x64x64xf32, #tpu.memory_space<vmem>>, vector<1x64x64xf32>
    %21 = vector.shape_cast %20 : vector<1x64x64xf32> to vector<64x64xf32>
    %cst_11 = arith.constant dense<0.000000e+00> : vector<16x64xf32>
    %22 = tpu.matmul %19, %21, %cst_11 {dimension_numbers = #tpu.dot_dimension_numbers<[1], [0], [0], [1], [0, 0, 1, 1], [], []>} : vector<16x64xf32>, vector<64x64xf32>, vector<16x64xf32> -> vector<16x64xf32>
    %23 = vector.extract_strided_slice %18 {offsets = [1, 0], sizes = [16, 64], strides = [1, 1]} : vector<18x64xf32> to vector<16x64xf32>
    %c1 = arith.constant 1 : index
    %c0_12 = arith.constant 0 : index
    %c0_13 = arith.constant 0 : index
    %24 = vector.load %arg4[%c1, %c0_12, %c0_13] : memref<3x64x64xf32, #tpu.memory_space<vmem>>, vector<1x64x64xf32>
    %25 = vector.shape_cast %24 : vector<1x64x64xf32> to vector<64x64xf32>
    %cst_14 = arith.constant dense<0.000000e+00> : vector<16x64xf32>
    %26 = tpu.matmul %23, %25, %cst_14 {dimension_numbers = #tpu.dot_dimension_numbers<[1], [0], [0], [1], [0, 0, 1, 1], [], []>} : vector<16x64xf32>, vector<64x64xf32>, vector<16x64xf32> -> vector<16x64xf32>
    %27 = arith.addf %22, %26 : vector<16x64xf32>
    %28 = vector.extract_strided_slice %18 {offsets = [2, 0], sizes = [16, 64], strides = [1, 1]} : vector<18x64xf32> to vector<16x64xf32>
    %c2 = arith.constant 2 : index
    %c0_15 = arith.constant 0 : index
    %c0_16 = arith.constant 0 : index
    %29 = vector.load %arg4[%c2, %c0_15, %c0_16] : memref<3x64x64xf32, #tpu.memory_space<vmem>>, vector<1x64x64xf32>
    %30 = vector.shape_cast %29 : vector<1x64x64xf32> to vector<64x64xf32>
    %cst_17 = arith.constant dense<0.000000e+00> : vector<16x64xf32>
    %31 = tpu.matmul %28, %30, %cst_17 {dimension_numbers = #tpu.dot_dimension_numbers<[1], [0], [0], [1], [0, 0, 1, 1], [], []>} : vector<16x64xf32>, vector<64x64xf32>, vector<16x64xf32> -> vector<16x64xf32>
    %32 = arith.addf %27, %31 : vector<16x64xf32>
    %c0_18 = arith.constant 0 : index
    %c0_19 = arith.constant 0 : index
    %33 = vector.load %arg5[%c0_18, %c0_19] : memref<1x64xf32, #tpu.memory_space<vmem>>, vector<1x64xf32>
    %34 = vector.broadcast %33 : vector<1x64xf32> to vector<16x64xf32>
    %35 = arith.addf %32, %34 : vector<16x64xf32>
    %cst_20 = arith.constant 0.000000e+00 : f32
    %36 = vector.broadcast %cst_20 : f32 to vector<16x64xf32>
    %37 = arith.maximumf %35, %36 : vector<16x64xf32>
    %c0_21 = arith.constant 0 : index
    %c0_22 = arith.constant 0 : index
    %38 = vector.load %arg6[%c0_21, %c0_22] : memref<64x256xf32, #tpu.memory_space<vmem>>, vector<64x256xf32>
    %cst_23 = arith.constant dense<0.000000e+00> : vector<16x256xf32>
    %39 = tpu.matmul %37, %38, %cst_23 {dimension_numbers = #tpu.dot_dimension_numbers<[1], [0], [0], [1], [0, 0, 1, 1], [], []>} : vector<16x64xf32>, vector<64x256xf32>, vector<16x256xf32> -> vector<16x256xf32>
    %c0_24 = arith.constant 0 : index
    %c0_25 = arith.constant 0 : index
    %40 = vector.load %arg7[%c0_24, %c0_25] : memref<1x256xf32, #tpu.memory_space<vmem>>, vector<1x256xf32>
    %41 = vector.broadcast %40 : vector<1x256xf32> to vector<16x256xf32>
    %42 = arith.addf %39, %41 : vector<16x256xf32>
    %43 = vector.extract_strided_slice %1 {offsets = [1, 0], sizes = [16, 256], strides = [1, 1]} : vector<18x256xf32> to vector<16x256xf32>
    %44 = arith.addf %42, %43 : vector<16x256xf32>
    %cst_26 = arith.constant 0.000000e+00 : f32
    %45 = vector.broadcast %cst_26 : f32 to vector<16x256xf32>
    %46 = arith.maximumf %44, %45 : vector<16x256xf32>
    %c0_27 = arith.constant 0 : index
    %c0_28 = arith.constant 0 : index
    %c0_29 = arith.constant 0 : index
    %47 = vector.load %arg8[%c0_27, %c0_28, %c0_29] : memref<1x16x256xf32, #tpu.memory_space<vmem>>, vector<1x16x256xf32>
    %48 = vector.shape_cast %47 : vector<1x16x256xf32> to vector<16x256xf32>
    %49 = vector.shape_cast %46 : vector<16x256xf32> to vector<1x16x256xf32>
    tpu.vector_store %arg8[%c0_27, %c0_28, %c0_29], %49 {strides = array<i32>} : memref<1x16x256xf32, #tpu.memory_space<vmem>>, vector<1x16x256xf32>,
    return
  }
  func.func @transform_0(%arg0: i32) -> (i32, i32, i32) {
    %c0_i32 = arith.constant 0 : i32
    %c0_i32_0 = arith.constant 0 : i32
    %c0_i32_1 = arith.constant 0 : i32
    return %arg0, %c0_i32, %c0_i32_0 : i32, i32, i32
  }
  func.func @transform_1(%arg0: i32) -> (i32, i32) {
    %c0_i32 = arith.constant 0 : i32
    %c0_i32_0 = arith.constant 0 : i32
    %c0_i32_1 = arith.constant 0 : i32
    return %c0_i32, %c0_i32_0 : i32, i32
  }
  func.func @transform_2(%arg0: i32) -> (i32, i32) {
    %c0_i32 = arith.constant 0 : i32
    %c0_i32_0 = arith.constant 0 : i32
    %c0_i32_1 = arith.constant 0 : i32
    return %c0_i32, %c0_i32_0 : i32, i32
  }
  func.func @transform_3(%arg0: i32) -> (i32, i32, i32) {
    %c0_i32 = arith.constant 0 : i32
    %c0_i32_0 = arith.constant 0 : i32
    %c0_i32_1 = arith.constant 0 : i32
    %c0_i32_2 = arith.constant 0 : i32
    return %c0_i32, %c0_i32_0, %c0_i32_1 : i32, i32, i32
  }
  func.func @transform_4(%arg0: i32) -> (i32, i32) {
    %c0_i32 = arith.constant 0 : i32
    %c0_i32_0 = arith.constant 0 : i32
    %c0_i32_1 = arith.constant 0 : i32
    return %c0_i32, %c0_i32_0 : i32, i32
  }
  func.func @transform_5(%arg0: i32) -> (i32, i32) {
    %c0_i32 = arith.constant 0 : i32
    %c0_i32_0 = arith.constant 0 : i32
    %c0_i32_1 = arith.constant 0 : i32
    return %c0_i32, %c0_i32_0 : i32, i32
  }
  func.func @transform_6(%arg0: i32) -> (i32, i32) {
    %c0_i32 = arith.constant 0 : i32
    %c0_i32_0 = arith.constant 0 : i32
    %c0_i32_1 = arith.constant 0 : i32
    return %c0_i32, %c0_i32_0 : i32, i32
  }
  func.func @transform_7(%arg0: i32) -> (i32, i32, i32) {
    %c0_i32 = arith.constant 0 : i32
    %c0_i32_0 = arith.constant 0 : i32
    %c0_i32_1 = arith.constant 0 : i32
    return %arg0, %c0_i32, %c0_i32_0 : i32, i32, i32
  }
}

</mosaic_0001>

<llo_original>
// kernel: tpu_custom_call.1
$region0: #{tpu_custom_call.1}
  #allocation0 [shape = 'u32[]', space=smem, size = 0x4, offset = 0x4, fixed_abs, tag = 'smem constant byte address 0x4 - core index']
  #allocation1 [shape = 'u32[144,128]{1,0:T(1,128)}', space=vmem, size = 0x12000, scoped, tag = 'internal scratch']
  %s0 = inlined_call_operand.vmem [shape: f32[2,18,256], index: 0, kind: input, shape index: {}]
  %s1 = inlined_call_operand.vmem [shape: f32[256,64], index: 1, kind: input, shape index: {}]
  %s2 = inlined_call_operand.vmem [shape: f32[1,64], index: 2, kind: input, shape index: {}]
  %s3 = inlined_call_operand.vmem [shape: f32[3,64,64], index: 3, kind: input, shape index: {}]
  %s4 = inlined_call_operand.vmem [shape: f32[1,64], index: 4, kind: input, shape index: {}]
  %s5 = inlined_call_operand.vmem [shape: f32[64,256], index: 5, kind: input, shape index: {}]
  %s6 = inlined_call_operand.vmem [shape: f32[1,256], index: 6, kind: input, shape index: {}]
  %s7 = inlined_call_operand.hbm [shape: f32[2,16,256], index: 7, kind: output, shape index: {}]
  %s8 = sld [smem:[#allocation0]]
  $region61: #{tpu_custom_call.1} parent=0
    _
  %s10 = ssub.s32 1, %s8
  %s11 = scalar_select 0, %s10, %s8
  $region1: #{tpu_custom_call.1} parent=0
    #allocation2 [shape = 'u8[32768]{0}', space=vmem, size = 0x8000, scoped, tag = 'output window, operand 0']
    #allocation3 [shape = 's32[2]{0}', space=sflag, size = 0x8, scoped, tag = 'scoped memory for tpu_custom_call.1']
    %12 = vsyncpa [#allocation3], 0
    %s13 = scalar_lea.sflag [#allocation3], 1
    %14 = vsyncpa %s13, 0
    loop: start=0, step=1, limit=4
    $region2: #{tpu_custom_call.1} parent=1 // loop_pre_header
      _
    $region3: #{tpu_custom_call.1} parent=1 // loop_header
      %s16 = sphi 0, %s20
      %p17 = scmp.ge.s32.totalorder %s16, 4
      %s26 = sphi 0, %s28
      %s29 = sphi 0, %s26
      %s30 = sphi 0, %s29
      %s46 = sphi 0, %s30
      %s50 = sphi 0, %s50
      %s52 = sphi 0, %s50
      %s53 = sphi 0, %s52
      %s67 = sphi 0, %s53
      %s71 = sphi 0, %s71
      %s73 = sphi 0, %s71
      %s74 = sphi 0, %s73
      %s88 = sphi 0, %s74
      %s92 = sphi 0, %s92
      %s94 = sphi 0, %s92
      %s95 = sphi 0, %s94
      %s109 = sphi 0, %s95
      %s113 = sphi 0, %s113
      %s115 = sphi 0, %s113
      %s116 = sphi 0, %s115
      %s130 = sphi 0, %s116
      %s134 = sphi 0, %s134
      %s136 = sphi 0, %s134
      %s137 = sphi 0, %s136
      %s151 = sphi 0, %s137
      %s155 = sphi 0, %s155
      %s157 = sphi 0, %s155
      %s158 = sphi 0, %s157
      %s172 = sphi 0, %s158
      %s178 = sphi 0, %s180
      %s181 = sphi 0, %s178
      %s182 = sphi 0, %s181
      %s198 = sphi 0, %s182
    $region4: #{tpu_custom_call.1} parent=1 // loop_header_branch
      %19 = sbr.rel (%p17) target = $region8
    $region5: #{tpu_custom_call.1} parent=1 // loop_body
      %s21 = ssub.s32 %s16, 1
      %s22 = ssub.s32 %s16, 2
      %s23 = sadd.s32 %s16, 1
      %s24 = ssub.s32 %s16, %s23
      %p25 = scmp.eq.s32.totalorder %s24, 0
      %s27 = sadd.s32 %s26, 1
      %s28 = scalar_select %p25, %s26, %s27
      %p31 = pneg %p25
      %p32 = scmp.eq.s32.totalorder %s16, 1
      %p33 = por %p31, %p32
      %p34 = scmp.ne.s32.totalorder %s26, %s29
      %p35 = scmp.eq.s32.totalorder %s16, 0
      %p36 = por %p34, %p35
      %p37 = scmp.ne.s32.totalorder %s26, %s29
      %p38 = scmp.eq.s32.totalorder %s21, 1
      %p39 = por %p37, %p38
      %p40 = scmp.ne.s32.totalorder %s29, %s30
      %p41 = scmp.eq.s32.totalorder %s21, 0
      %p42 = por %p40, %p41
      %p43 = scmp.ne.s32.totalorder %s29, %s30
      %p44 = scmp.eq.s32.totalorder %s22, 1
      %p45 = por %p43, %p44
      %p47 = scmp.ne.s32.totalorder %s30, %s46
      %p48 = scmp.eq.s32.totalorder %s22, 0
      %p49 = por %p47, %p48
      %s51 = sadd.s32 %s50, 1
      %p54 = scmp.eq.s32.totalorder %s16, 1
      %p55 = scmp.ne.s32.totalorder %s50, %s52
      %p56 = scmp.eq.s32.totalorder %s16, 0
      %p57 = por %p55, %p56
      %p58 = scmp.ne.s32.totalorder %s50, %s52
      %p59 = scmp.eq.s32.totalorder %s21, 1
      %p60 = por %p58, %p59
      %p61 = scmp.ne.s32.totalorder %s52, %s53
      %p62 = scmp.eq.s32.totalorder %s21, 0
      %p63 = por %p61, %p62
      %p64 = scmp.ne.s32.totalorder %s52, %s53
      %p65 = scmp.eq.s32.totalorder %s22, 1
      %p66 = por %p64, %p65
      %p68 = scmp.ne.s32.totalorder %s53, %s67
      %p69 = scmp.eq.s32.totalorder %s22, 0
      %p70 = por %p68, %p69
      %s72 = sadd.s32 %s71, 1
      %p75 = scmp.eq.s32.totalorder %s16, 1
      %p76 = scmp.ne.s32.totalorder %s71, %s73
      %p77 = scmp.eq.s32.totalorder %s16, 0
      %p78 = por %p76, %p77
      %p79 = scmp.ne.s32.totalorder %s71, %s73
      %p80 = scmp.eq.s32.totalorder %s21, 1
      %p81 = por %p79, %p80
      %p82 = scmp.ne.s32.totalorder %s73, %s74
      %p83 = scmp.eq.s32.totalorder %s21, 0
      %p84 = por %p82, %p83
      %p85 = scmp.ne.s32.totalorder %s73, %s74
      %p86 = scmp.eq.s32.totalorder %s22, 1
      %p87 = por %p85, %p86
      %p89 = scmp.ne.s32.totalorder %s74, %s88
      %p90 = scmp.eq.s32.totalorder %s22, 0
      %p91 = por %p89, %p90
      %s93 = sadd.s32 %s92, 1
      %p96 = scmp.eq.s32.totalorder %s16, 1
      %p97 = scmp.ne.s32.totalorder %s92, %s94
      %p98 = scmp.eq.s32.totalorder %s16, 0
      %p99 = por %p97, %p98
      %p100 = scmp.ne.s32.totalorder %s92, %s94
      %p101 = scmp.eq.s32.totalorder %s21, 1
      %p102 = por %p100, %p101
      %p103 = scmp.ne.s32.totalorder %s94, %s95
      %p104 = scmp.eq.s32.totalorder %s21, 0
      %p105 = por %p103, %p104
      %p106 = scmp.ne.s32.totalorder %s94, %s95
      %p107 = scmp.eq.s32.totalorder %s22, 1
      %p108 = por %p106, %p107
      %p110 = scmp.ne.s32.totalorder %s95, %s109
      %p111 = scmp.eq.s32.totalorder %s22, 0
      %p112 = por %p110, %p111
      %s114 = sadd.s32 %s113, 1
      %p117 = scmp.eq.s32.totalorder %s16, 1
      %p118 = scmp.ne.s32.totalorder %s113, %s115
      %p119 = scmp.eq.s32.totalorder %s16, 0
      %p120 = por %p118, %p119
      %p121 = scmp.ne.s32.totalorder %s113, %s115
      %p122 = scmp.eq.s32.totalorder %s21, 1
      %p123 = por %p121, %p122
      %p124 = scmp.ne.s32.totalorder %s115, %s116
      %p125 = scmp.eq.s32.totalorder %s21, 0
      %p126 = por %p124, %p125
      %p127 = scmp.ne.s32.totalorder %s115, %s116
      %p128 = scmp.eq.s32.totalorder %s22, 1
      %p129 = por %p127, %p128
      %p131 = scmp.ne.s32.totalorder %s116, %s130
      %p132 = scmp.eq.s32.totalorder %s22, 0
      %p133 = por %p131, %p132
      %s135 = sadd.s32 %s134, 1
      %p138 = scmp.eq.s32.totalorder %s16, 1
      %p139 = scmp.ne.s32.totalorder %s134, %s136
      %p140 = scmp.eq.s32.totalorder %s16, 0
      %p141 = por %p139, %p140
      %p142 = scmp.ne.s32.totalorder %s134, %s136
      %p143 = scmp.eq.s32.totalorder %s21, 1
      %p144 = por %p142, %p143
      %p145 = scmp.ne.s32.totalorder %s136, %s137
      %p146 = scmp.eq.s32.totalorder %s21, 0
      %p147 = por %p145, %p146
      %p148 = scmp.ne.s32.totalorder %s136, %s137
      %p149 = scmp.eq.s32.totalorder %s22, 1
      %p150 = por %p148, %p149
      %p152 = scmp.ne.s32.totalorder %s137, %s151
      %p153 = scmp.eq.s32.totalorder %s22, 0
      %p154 = por %p152, %p153
      %s156 = sadd.s32 %s155, 1
      %p159 = scmp.eq.s32.totalorder %s16, 1
      %p160 = scmp.ne.s32.totalorder %s155, %s157
      %p161 = scmp.eq.s32.totalorder %s16, 0
      %p162 = por %p160, %p161
      %p163 = scmp.ne.s32.totalorder %s155, %s157
      %p164 = scmp.eq.s32.totalorder %s21, 1
      %p165 = por %p163, %p164
      %p166 = scmp.ne.s32.totalorder %s157, %s158
      %p167 = scmp.eq.s32.totalorder %s21, 0
      %p168 = por %p166, %p167
      %p169 = scmp.ne.s32.totalorder %s157, %s158
      %p170 = scmp.eq.s32.totalorder %s22, 1
      %p171 = por %p169, %p170
      %p173 = scmp.ne.s32.totalorder %s158, %s172
      %p174 = scmp.eq.s32.totalorder %s22, 0
      %p175 = por %p173, %p174
      %s176 = ssub.s32 %s16, %s23
      %p177 = scmp.eq.s32.totalorder %s176, 0
      %s179 = sadd.s32 %s178, 1
      %s180 = scalar_select %p177, %s178, %s179
      %p183 = pneg %p177
      %p184 = scmp.eq.s32.totalorder %s16, 1
      %p185 = por %p183, %p184
      %p186 = scmp.ne.s32.totalorder %s178, %s181
      %p187 = scmp.eq.s32.totalorder %s16, 0
      %p188 = por %p186, %p187
      %p189 = scmp.ne.s32.totalorder %s178, %s181
      %p190 = scmp.eq.s32.totalorder %s21, 1
      %p191 = por %p189, %p190
      %p192 = scmp.ne.s32.totalorder %s181, %s182
      %p193 = scmp.eq.s32.totalorder %s21, 0
      %p194 = por %p192, %p193
      %p195 = scmp.ne.s32.totalorder %s181, %s182
      %p196 = scmp.eq.s32.totalorder %s22, 1
      %p197 = por %p195, %p196
      %p199 = scmp.ne.s32.totalorder %s182, %s198
      %p200 = scmp.eq.s32.totalorder %s22, 0
      %p201 = por %p199, %p200
      %p202 = scmp.le.s32.totalorder 1, %s16
      %p203 = scmp.lt.s32.totalorder %s16, 3
      %p204 = pnand %p202, %p203
      %p205 = pneg %p204
      // Predicated region
      $region9: #{tpu_custom_call.1} parent=5 // pred_check
        _
      $region10: #{tpu_custom_call.1} parent=5 // pred_check_branch
        %207 = sbr.rel (%p204) target = $region12
      $region11: #{tpu_custom_call.1} parent=5 // pred_region
        %s208 = ssub.s32 %s16, 1
        // Predicated region
        $region13: #{tpu_custom_call.1} parent=11 // pred_check
          %p209 = pneg %p63
        $region14: #{tpu_custom_call.1} parent=11 // pred_check_branch
          %211 = sbr.rel (%p209) target = $region16
        $region15: #{tpu_custom_call.1} parent=11 // pred_region
          _
        $region16: #{tpu_custom_call.1} parent=11 // pred_fallthru
          _
        // Predicated region
        $region17: #{tpu_custom_call.1} parent=11 // pred_check
          %p212 = pneg %p84
        $region18: #{tpu_custom_call.1} parent=11 // pred_check_branch
          %214 = sbr.rel (%p212) target = $region20
        $region19: #{tpu_custom_call.1} parent=11 // pred_region
          _
        $region20: #{tpu_custom_call.1} parent=11 // pred_fallthru
          _
        // Predicated region
        $region21: #{tpu_custom_call.1} parent=11 // pred_check
          %p215 = pneg %p105
        $region22: #{tpu_custom_call.1} parent=11 // pred_check_branch
          %217 = sbr.rel (%p215) target = $region24
        $region23: #{tpu_custom_call.1} parent=11 // pred_region
          _
        $region24: #{tpu_custom_call.1} parent=11 // pred_fallthru
          _
        // Predicated region
        $region25: #{tpu_custom_call.1} parent=11 // pred_check
          %p218 = pneg %p126
        $region26: #{tpu_custom_call.1} parent=11 // pred_check_branch
          %220 = sbr.rel (%p218) target = $region28
        $region27: #{tpu_custom_call.1} parent=11 // pred_region
          _
        $region28: #{tpu_custom_call.1} parent=11 // pred_fallthru
          _
        // Predicated region
        $region29: #{tpu_custom_call.1} parent=11 // pred_check
          %p221 = pneg %p147
        $region30: #{tpu_custom_call.1} parent=11 // pred_check_branch
          %223 = sbr.rel (%p221) target = $region32
        $region31: #{tpu_custom_call.1} parent=11 // pred_region
          _
        $region32: #{tpu_custom_call.1} parent=11 // pred_fallthru
          _
        // Predicated region
        $region33: #{tpu_custom_call.1} parent=11 // pred_check
          %p224 = pneg %p168
        $region34: #{tpu_custom_call.1} parent=11 // pred_check_branch
          %226 = sbr.rel (%p224) target = $region36
        $region35: #{tpu_custom_call.1} parent=11 // pred_region
          _
        $region36: #{tpu_custom_call.1} parent=11 // pred_fallthru
          _
      $region12: #{tpu_custom_call.1} parent=5 // pred_fallthru
        _
      %p227 = scmp.lt.s32.totalorder %s16, 2
      // Predicated region
      $region37: #{tpu_custom_call.1} parent=5 // pred_check
        %p228 = pneg %p227
      $region38: #{tpu_custom_call.1} parent=5 // pred_check_branch
        %230 = sbr.rel (%p228) target = $region40
      $region39: #{tpu_custom_call.1} parent=5 // pred_region
        // Predicated region
        $region41: #{tpu_custom_call.1} parent=39 // pred_check
          %p231 = pneg %p36
        $region42: #{tpu_custom_call.1} parent=39 // pred_check_branch
          %233 = sbr.rel (%p231) target = $region44
        $region43: #{tpu_custom_call.1} parent=39 // pred_region
          %p234 = scmp.lt.s32.totalorder %s16, 1
          %s235 = scalar_select %p234, %s16, 1
          %s236 = smul.addr %s235, 6
          %s237 = smul.addr %s236, 8
          %s238 = scalar_lea.vmem %s0, %s237
        $region44: #{tpu_custom_call.1} parent=39 // pred_fallthru
          _
      $region40: #{tpu_custom_call.1} parent=5 // pred_fallthru
        _
      %p239 = scmp.le.s32.totalorder 1, %s16
      %p240 = scmp.lt.s32.totalorder %s16, 3
      %p241 = pnand %p239, %p240
      %p242 = pneg %p241
      // Predicated region
      $region45: #{tpu_custom_call.1} parent=5 // pred_check
        _
      $region46: #{tpu_custom_call.1} parent=5 // pred_check_branch
        %244 = sbr.rel (%p241) target = $region48
      $region47: #{tpu_custom_call.1} parent=5 // pred_region
        %s245 = ssub.s32 %s16, 1
        %p246 = scmp.lt.s32.totalorder %s21, 1
        %s247 = scalar_select %p246, %s21, 1
        %s248 = smul.addr %s247, 6
        %s249 = smul.addr %s248, 8
        %s250 = scalar_lea.vmem %s0, %s249
        %p251 = pneg %p42
        %p252 = pneg %p39
        %p253 = pneg %p63
        %p254 = pneg %p60
        %p255 = pneg %p84
        %p256 = pneg %p81
        %p257 = pneg %p105
        %p258 = pneg %p102
        %p259 = pneg %p126
        %p260 = pneg %p123
        %p261 = pneg %p147
        %p262 = pneg %p144
        %p263 = pneg %p168
        %p264 = pneg %p165
        %p265 = pneg %p194
        %p266 = pneg %p191
        %s267 = sand.u32 %s181, 1
        %s268 = scalar_lea.sflag [#allocation3], %s267
        %s269 = sand.u32 %s181, 1
        %s270 = smul.addr %s269, 32
        %s271 = scalar_lea.vmem [#allocation2], %s270
        %p272 = scmp.lt.s32.totalorder %s21, 1
        %s273 = scalar_select %p272, %s21, 1
        %s274 = smul.addr %s273, 6
        %s275 = smul.addr %s274, 8
        %s276 = scalar_lea.vmem %s0, %s275
        %v277 = vld [vmem:[%s276] sm:$0xff]
        %v278 = vld [vmem:[%s276 + $0x8] sm:$0xff]
        %v279 = vld [vmem:[%s276 + $0x10] sm:$0xff]
        %v280 = vld [vmem:[%s276 + $0x18] sm:$0xff]
        %v281 = vld [vmem:[%s276 + $0x20] sm:$0x3]
        %v282 = vld [vmem:[%s276 + $0x28] sm:$0x3]
        %v283 = vld [vmem:[%s1] sm:$0xff]
        %v284 = vld [vmem:[%s1 + $0x8] sm:$0xff]
        %v285 = vld [vmem:[%s1 + $0x10] sm:$0xff]
        %v286 = vld [vmem:[%s1 + $0x18] sm:$0xff]
        %v287 = vld [vmem:[%s1 + $0x20] sm:$0xff]
        %v288 = vld [vmem:[%s1 + $0x28] sm:$0xff]
        %v289 = vld [vmem:[%s1 + $0x30] sm:$0xff]
        %v290 = vld [vmem:[%s1 + $0x38] sm:$0xff]
        %v291 = vld [vmem:[%s1 + $0x40] sm:$0xff]
        %v292 = vld [vmem:[%s1 + $0x48] sm:$0xff]
        %v293 = vld [vmem:[%s1 + $0x50] sm:$0xff]
        %v294 = vld [vmem:[%s1 + $0x58] sm:$0xff]
        %v295 = vld [vmem:[%s1 + $0x60] sm:$0xff]
        %v296 = vld [vmem:[%s1 + $0x68] sm:$0xff]
        %v297 = vld [vmem:[%s1 + $0x70] sm:$0xff]
        %v298 = vld [vmem:[%s1 + $0x78] sm:$0xff]
        %v299 = vld [vmem:[%s1 + $0x80] sm:$0xff]
        %v300 = vld [vmem:[%s1 + $0x88] sm:$0xff]
        %v301 = vld [vmem:[%s1 + $0x90] sm:$0xff]
        %v302 = vld [vmem:[%s1 + $0x98] sm:$0xff]
        %v303 = vld [vmem:[%s1 + $0xa0] sm:$0xff]
        %v304 = vld [vmem:[%s1 + $0xa8] sm:$0xff]
        %v305 = vld [vmem:[%s1 + $0xb0] sm:$0xff]
        %v306 = vld [vmem:[%s1 + $0xb8] sm:$0xff]
        %v307 = vld [vmem:[%s1 + $0xc0] sm:$0xff]
        %v308 = vld [vmem:[%s1 + $0xc8] sm:$0xff]
        %v309 = vld [vmem:[%s1 + $0xd0] sm:$0xff]
        %v310 = vld [vmem:[%s1 + $0xd8] sm:$0xff]
        %v311 = vld [vmem:[%s1 + $0xe0] sm:$0xff]
        %v312 = vld [vmem:[%s1 + $0xe8] sm:$0xff]
        %v313 = vld [vmem:[%s1 + $0xf0] sm:$0xff]
        %v314 = vld [vmem:[%s1 + $0xf8] sm:$0xff]
        %v315 = vld [vmem:[%s2] sm:$0x1]
        %v317 = vlaneseq
        %v318 = vshrl.u32 %v317, 7
        %v319 = vsub.s32 0, %v318
        %v320 = vrot.slane %v315, %v319
        %322 = vmatprep.subr.mxu0 0.0
        %323 = vmatpush1.msra.mxu0 %v283
        %324 = vmatprep.subr.mxu0 0.0
        %325 = vmatpush1.msra.mxu0 %v284
        %326 = vmatprep.subr.mxu0 0.0
        %327 = vmatpush1.msra.mxu0 %v285
        %328 = vmatprep.subr.mxu0 0.0
        %329 = vmatpush1.msra.mxu0 %v286
        %330 = vmatprep.subr.mxu0 0.0
        %331 = vmatpush1.msra.mxu0 %v287
        %332 = vmatprep.subr.mxu0 0.0
        %333 = vmatpush1.msra.mxu0 %v288
        %334 = vmatprep.subr.mxu0 0.0
        %335 = vmatpush1.msra.mxu0 %v289
        %336 = vmatprep.subr.mxu0 0.0
        %337 = vmatpush1.msra.mxu0 %v290
        %338 = vmatprep.subr.mxu0 0.0
        %339 = vmatpush1.msra.mxu0 %v291
        %340 = vmatprep.subr.mxu0 0.0
        %341 = vmatpush1.msra.mxu0 %v292
        %342 = vmatprep.subr.mxu0 0.0
        %343 = vmatpush1.msra.mxu0 %v293
        %344 = vmatprep.subr.mxu0 0.0
        %345 = vmatpush1.msra.mxu0 %v294
        %346 = vmatprep.subr.mxu0 0.0
        %347 = vmatpush1.msra.mxu0 %v295
        %348 = vmatprep.subr.mxu0 0.0
        %349 = vmatpush1.msra.mxu0 %v296
        %350 = vmatprep.subr.mxu0 0.0
        %351 = vmatpush1.msra.mxu0 %v297
        %352 = vmatprep.subr.mxu0 0.0
        %353 = vmatpush1.msra.mxu0 %v298
        %354 = vmatprep.subr.mxu0 0.0
        %355 = vmatpush1.msra.mxu0 %v299
        %356 = vmatprep.subr.mxu0 0.0
        %357 = vmatpush1.msra.mxu0 %v300
        %358 = vmatprep.subr.mxu0 0.0
        %359 = vmatpush1.msra.mxu0 %v301
        %360 = vmatprep.subr.mxu0 0.0
        %361 = vmatpush1.msra.mxu0 %v302
        %362 = vmatprep.subr.mxu0 0.0
        %363 = vmatpush1.msra.mxu0 %v303
        %364 = vmatprep.subr.mxu0 0.0
        %365 = vmatpush1.msra.mxu0 %v304
        %366 = vmatprep.subr.mxu0 0.0
        %367 = vmatpush1.msra.mxu0 %v305
        %368 = vmatprep.subr.mxu0 0.0
        %369 = vmatpush1.msra.mxu0 %v306
        %370 = vmatprep.subr.mxu0 0.0
        %371 = vmatpush1.msra.mxu0 %v307
        %372 = vmatprep.subr.mxu0 0.0
        %373 = vmatpush1.msra.mxu0 %v308
        %374 = vmatprep.subr.mxu0 0.0
        %375 = vmatpush1.msra.mxu0 %v309
        %376 = vmatprep.subr.mxu0 0.0
        %377 = vmatpush1.msra.mxu0 %v310
        %378 = vmatprep.subr.mxu0 0.0
        %379 = vmatpush1.msra.mxu0 %v311
        %380 = vmatprep.subr.mxu0 0.0
        %381 = vmatpush1.msra.mxu0 %v312
        %382 = vmatprep.subr.mxu0 0.0
        %383 = vmatpush1.msra.mxu0 %v313
        %384 = vmatprep.subr.mxu0 0.0
        %385 = vmatpush1.msra.mxu0 %v314
        %386 = vmatprep.mubr.f32.mxu0 %v278
        %387 = vmatmul.mubr.f32.gmra.mrb[0].mxu0 %v277
        %v388 = vpop.f32.mrb[0].mxu0
        %v389 = vadd.f32 %v320, %v388
        %v390 = vpop.f32.mrb[0].mxu0
        %391 = vmatprep.mubr.f32.mxu0 %v280
        %392 = vmatmul.mubr.f32.gmra.mrb[0].mxu0 %v279
        %v393 = vpop.f32.mrb[0].mxu0
        %v394 = vadd.f32 %v320, %v393
        %v395 = vpop.f32.mrb[0].mxu0
        %396 = vmatprep.mubr.f32.mxu0 %v282
        %397 = vmatmul.mubr.f32.gmra.mrb[0].mxu0 %v281
        %v398 = vpop.f32.mrb[0].mxu0
        %v399 = vadd.f32 %v320, %v398
        %v400 = vpop.f32.mrb[0].mxu0
        %401 = vdwg.mxu0
        %v402 = vmax.f32 %v389, 0.0
        %v403 = vmax.f32 %v394, 0.0
        %v404 = vmax.f32 %v399, 0.0
        %v405 = vlaneseq
        %v406 = vshrl.u32 %v405, 7
        %v407 = vadd.s32 %v406, 8
        %v408 = vadd.s32 %v406, 16
        %vm409 = vcmp.ge.s32.totalorder %v406, 1
        %vm410 = vcmp.ge.s32.totalorder %v407, 1
        %vm411 = vcmp.ge.s32.totalorder %v408, 1
        %vm412 = vcmp.le.s32.totalorder %v406, 16
        %vm413 = vcmp.le.s32.totalorder %v407, 16
        %vm414 = vcmp.le.s32.totalorder %v408, 16
        %vm415 = vmand %vm409, %vm412
        %vm416 = vmand %vm410, %vm413
        %vm417 = vmand %vm411, %vm414
        %v418 = vsel %vm415, 1, 0
        %v419 = vsel %vm416, 1, 0
        %v420 = vsel %vm417, 1, 0
        %vm421 = vcmp.eq.s32.totalorder %v418, 1
        %vm422 = vcmp.eq.s32.totalorder %v419, 1
        %vm423 = vcmp.eq.s32.totalorder %v420, 1
        %v424 = vsel %vm421, %v402, 0.0
        %v425 = vsel %vm422, %v403, 0.0
        %v426 = vsel %vm423, %v404, 0.0
        %v427 = vld [vmem:[%s3] sm:$0xff]
        %v428 = vld [vmem:[%s3 + $0x8] sm:$0xff]
        %v429 = vld [vmem:[%s3 + $0x10] sm:$0xff]
        %v430 = vld [vmem:[%s3 + $0x18] sm:$0xff]
        %v431 = vld [vmem:[%s3 + $0x20] sm:$0xff]
        %v432 = vld [vmem:[%s3 + $0x28] sm:$0xff]
        %v433 = vld [vmem:[%s3 + $0x30] sm:$0xff]
        %v434 = vld [vmem:[%s3 + $0x38] sm:$0xff]
        %s435 = scalar_lea.vmem %s3, 64
        %v436 = vld [vmem:[%s435] sm:$0xff]
        %v437 = vld [vmem:[%s435 + $0x8] sm:$0xff]
        %v438 = vld [vmem:[%s435 + $0x10] sm:$0xff]
        %v439 = vld [vmem:[%s435 + $0x18] sm:$0xff]
        %v440 = vld [vmem:[%s435 + $0x20] sm:$0xff]
        %v441 = vld [vmem:[%s435 + $0x28] sm:$0xff]
        %v442 = vld [vmem:[%s435 + $0x30] sm:$0xff]
        %v443 = vld [vmem:[%s435 + $0x38] sm:$0xff]
        %vm447 = vcmask 1046528
        %v448 = vrot.slane %v424, 1
        %v449 = vrot.slane %v425, 1
        %v450 = vsel %vm447, %v448, %v449
        %v451 = vrot.slane %v426, 1
        %v452 = vsel %vm447, %v449, %v451
        %vm453 = vcmask 523264
        %v454 = vsel %vm453, %v450, 0
        %v456 = vsel %vm453, %v452, 0
        %458 = vmatprep.subr.mxu0 0.0
        %459 = vmatpush1.msra.mxu0 %v436
        %460 = vmatprep.subr.mxu0 0.0
        %461 = vmatpush1.msra.mxu0 %v437
        %462 = vmatprep.subr.mxu0 0.0
        %463 = vmatpush1.msra.mxu0 %v438
        %464 = vmatprep.subr.mxu0 0.0
        %465 = vmatpush1.msra.mxu0 %v439
        %466 = vmatprep.subr.mxu0 0.0
        %467 = vmatpush1.msra.mxu0 %v440
        %468 = vmatprep.subr.mxu0 0.0
        %469 = vmatpush1.msra.mxu0 %v441
        %470 = vmatprep.subr.mxu0 0.0
        %471 = vmatpush1.msra.mxu0 %v442
        %472 = vmatprep.subr.mxu0 0.0
        %473 = vmatpush1.msra.mxu0 %v443
        %474 = vmatprep.subr.mxu0 0.0
        %475 = vmatpush1.msra.mxu0 0.0
        %476 = vmatprep.subr.mxu0 0.0
        %477 = vmatpush1.msra.mxu0 0.0
        %478 = vmatprep.subr.mxu0 0.0
        %479 = vmatpush1.msra.mxu0 0.0
        %480 = vmatprep.subr.mxu0 0.0
        %481 = vmatpush1.msra.mxu0 0.0
        %482 = vmatprep.subr.mxu0 0.0
        %483 = vmatpush1.msra.mxu0 0.0
        %484 = vmatprep.subr.mxu0 0.0
        %485 = vmatpush1.msra.mxu0 0.0
        %486 = vmatprep.subr.mxu0 0.0
        %487 = vmatpush1.msra.mxu0 0.0
        %488 = vmatprep.subr.mxu0 0.0
        %489 = vmatpush1.msra.mxu0 0.0
        %490 = vmatprep.subr.mxu0 0.0
        %491 = vmatpush1.msra.mxu0 0.0
        %492 = vmatprep.subr.mxu0 0.0
        %493 = vmatpush1.msra.mxu0 0.0
        %494 = vmatprep.subr.mxu0 0.0
        %495 = vmatpush1.msra.mxu0 0.0
        %496 = vmatprep.subr.mxu0 0.0
        %497 = vmatpush1.msra.mxu0 0.0
        %498 = vmatprep.subr.mxu0 0.0
        %499 = vmatpush1.msra.mxu0 0.0
        %500 = vmatprep.subr.mxu0 0.0
        %501 = vmatpush1.msra.mxu0 0.0
        %502 = vmatprep.subr.mxu0 0.0
        %503 = vmatpush1.msra.mxu0 0.0
        %504 = vmatprep.subr.mxu0 0.0
        %505 = vmatpush1.msra.mxu0 0.0
        %506 = vmatprep.subr.mxu0 0.0
        %507 = vmatpush1.msra.mxu0 0.0
        %508 = vmatprep.subr.mxu0 0.0
        %509 = vmatpush1.msra.mxu0 0.0
        %510 = vmatprep.subr.mxu0 0.0
        %511 = vmatpush1.msra.mxu0 0.0
        %512 = vmatprep.subr.mxu0 0.0
        %513 = vmatpush1.msra.mxu0 0.0
        %514 = vmatprep.subr.mxu0 0.0
        %515 = vmatpush1.msra.mxu0 0.0
        %516 = vmatprep.subr.mxu0 0.0
        %517 = vmatpush1.msra.mxu0 0.0
        %518 = vmatprep.subr.mxu0 0.0
        %519 = vmatpush1.msra.mxu0 0.0
        %520 = vmatprep.subr.mxu0 0.0
        %521 = vmatpush1.msra.mxu0 0.0
        %522 = vmatprep.mubr.f32.mxu0 0.0
        %523 = vmatmul.mubr.f32.gmra.mrb[0].mxu0 %v454
        %v524 = vpop.f32.mrb[0].mxu0
        %v525 = vadd.f32 0.0, %v524
        %v526 = vpop.f32.mrb[0].mxu0
        %527 = vmatprep.mubr.f32.mxu0 0.0
        %528 = vmatmul.mubr.f32.gmra.mrb[0].mxu0 %v456
        %v529 = vpop.f32.mrb[0].mxu0
        %v530 = vadd.f32 0.0, %v529
        %v531 = vpop.f32.mrb[0].mxu0
        %532 = vdwg.mxu0
        %v533 = vsel %vm453, %v424, 0
        %v535 = vsel %vm453, %v425, 0
        %537 = vmatprep.subr.mxu0 0.0
        %538 = vmatpush1.msra.mxu0 %v427
        %539 = vmatprep.subr.mxu0 0.0
        %540 = vmatpush1.msra.mxu0 %v428
        %541 = vmatprep.subr.mxu0 0.0
        %542 = vmatpush1.msra.mxu0 %v429
        %543 = vmatprep.subr.mxu0 0.0
        %544 = vmatpush1.msra.mxu0 %v430
        %545 = vmatprep.subr.mxu0 0.0
        %546 = vmatpush1.msra.mxu0 %v431
        %547 = vmatprep.subr.mxu0 0.0
        %548 = vmatpush1.msra.mxu0 %v432
        %549 = vmatprep.subr.mxu0 0.0
        %550 = vmatpush1.msra.mxu0 %v433
        %551 = vmatprep.subr.mxu0 0.0
        %552 = vmatpush1.msra.mxu0 %v434
        %553 = vmatprep.subr.mxu0 0.0
        %554 = vmatpush1.msra.mxu0 0.0
        %555 = vmatprep.subr.mxu0 0.0
        %556 = vmatpush1.msra.mxu0 0.0
        %557 = vmatprep.subr.mxu0 0.0
        %558 = vmatpush1.msra.mxu0 0.0
        %559 = vmatprep.subr.mxu0 0.0
        %560 = vmatpush1.msra.mxu0 0.0
        %561 = vmatprep.subr.mxu0 0.0
        %562 = vmatpush1.msra.mxu0 0.0
        %563 = vmatprep.subr.mxu0 0.0
        %564 = vmatpush1.msra.mxu0 0.0
        %565 = vmatprep.subr.mxu0 0.0
        %566 = vmatpush1.msra.mxu0 0.0
        %567 = vmatprep.subr.mxu0 0.0
        %568 = vmatpush1.msra.mxu0 0.0
        %569 = vmatprep.subr.mxu0 0.0
        %570 = vmatpush1.msra.mxu0 0.0
        %571 = vmatprep.subr.mxu0 0.0
        %572 = vmatpush1.msra.mxu0 0.0
        %573 = vmatprep.subr.mxu0 0.0
        %574 = vmatpush1.msra.mxu0 0.0
        %575 = vmatprep.subr.mxu0 0.0
        %576 = vmatpush1.msra.mxu0 0.0
        %577 = vmatprep.subr.mxu0 0.0
        %578 = vmatpush1.msra.mxu0 0.0
        %579 = vmatprep.subr.mxu0 0.0
        %580 = vmatpush1.msra.mxu0 0.0
        %581 = vmatprep.subr.mxu0 0.0
        %582 = vmatpush1.msra.mxu0 0.0
        %583 = vmatprep.subr.mxu0 0.0
        %584 = vmatpush1.msra.mxu0 0.0
        %585 = vmatprep.subr.mxu0 0.0
        %586 = vmatpush1.msra.mxu0 0.0
        %587 = vmatprep.subr.mxu0 0.0
        %588 = vmatpush1.msra.mxu0 0.0
        %589 = vmatprep.subr.mxu0 0.0
        %590 = vmatpush1.msra.mxu0 0.0
        %591 = vmatprep.subr.mxu0 0.0
        %592 = vmatpush1.msra.mxu0 0.0
        %593 = vmatprep.subr.mxu0 0.0
        %594 = vmatpush1.msra.mxu0 0.0
        %595 = vmatprep.subr.mxu0 0.0
        %596 = vmatpush1.msra.mxu0 0.0
        %597 = vmatprep.subr.mxu0 0.0
        %598 = vmatpush1.msra.mxu0 0.0
        %599 = vmatprep.subr.mxu0 0.0
        %600 = vmatpush1.msra.mxu0 0.0
        %601 = vmatprep.mubr.f32.mxu0 0.0
        %602 = vmatmul.mubr.f32.gmra.mrb[0].mxu0 %v533
        %v603 = vpop.f32.mrb[0].mxu0
        %v604 = vadd.f32 %v525, %v603
        %v605 = vpop.f32.mrb[0].mxu0
        %606 = vmatprep.mubr.f32.mxu0 0.0
        %607 = vmatmul.mubr.f32.gmra.mrb[0].mxu0 %v535
        %v608 = vpop.f32.mrb[0].mxu0
        %v609 = vadd.f32 %v530, %v608
        %v610 = vpop.f32.mrb[0].mxu0
        %611 = vdwg.mxu0
        %s612 = scalar_lea.vmem %s3, 128
        %v613 = vld [vmem:[%s612] sm:$0xff]
        %v614 = vld [vmem:[%s612 + $0x8] sm:$0xff]
        %v615 = vld [vmem:[%s612 + $0x10] sm:$0xff]
        %v616 = vld [vmem:[%s612 + $0x18] sm:$0xff]
        %v617 = vld [vmem:[%s612 + $0x20] sm:$0xff]
        %v618 = vld [vmem:[%s612 + $0x28] sm:$0xff]
        %v619 = vld [vmem:[%s612 + $0x30] sm:$0xff]
        %v620 = vld [vmem:[%s612 + $0x38] sm:$0xff]
        %vm621 = vcmask 1045504
        %v622 = vrot.slane %v424, 2
        %v623 = vrot.slane %v425, 2
        %v624 = vsel %vm621, %v622, %v623
        %v625 = vrot.slane %v426, 2
        %v626 = vsel %vm621, %v623, %v625
        %v627 = vsel %vm453, %v624, 0
        %v629 = vsel %vm453, %v626, 0
        %631 = vmatprep.subr.mxu0 0.0
        %632 = vmatpush1.msra.mxu0 %v613
        %633 = vmatprep.subr.mxu0 0.0
        %634 = vmatpush1.msra.mxu0 %v614
        %635 = vmatprep.subr.mxu0 0.0
        %636 = vmatpush1.msra.mxu0 %v615
        %637 = vmatprep.subr.mxu0 0.0
        %638 = vmatpush1.msra.mxu0 %v616
        %639 = vmatprep.subr.mxu0 0.0
        %640 = vmatpush1.msra.mxu0 %v617
        %641 = vmatprep.subr.mxu0 0.0
        %642 = vmatpush1.msra.mxu0 %v618
        %643 = vmatprep.subr.mxu0 0.0
        %644 = vmatpush1.msra.mxu0 %v619
        %645 = vmatprep.subr.mxu0 0.0
        %646 = vmatpush1.msra.mxu0 %v620
        %647 = vmatprep.subr.mxu0 0.0
        %648 = vmatpush1.msra.mxu0 0.0
        %649 = vmatprep.subr.mxu0 0.0
        %650 = vmatpush1.msra.mxu0 0.0
        %651 = vmatprep.subr.mxu0 0.0
        %652 = vmatpush1.msra.mxu0 0.0
        %653 = vmatprep.subr.mxu0 0.0
        %654 = vmatpush1.msra.mxu0 0.0
        %655 = vmatprep.subr.mxu0 0.0
        %656 = vmatpush1.msra.mxu0 0.0
        %657 = vmatprep.subr.mxu0 0.0
        %658 = vmatpush1.msra.mxu0 0.0
        %659 = vmatprep.subr.mxu0 0.0
        %660 = vmatpush1.msra.mxu0 0.0
        %661 = vmatprep.subr.mxu0 0.0
        %662 = vmatpush1.msra.mxu0 0.0
        %663 = vmatprep.subr.mxu0 0.0
        %664 = vmatpush1.msra.mxu0 0.0
        %665 = vmatprep.subr.mxu0 0.0
        %666 = vmatpush1.msra.mxu0 0.0
        %667 = vmatprep.subr.mxu0 0.0
        %668 = vmatpush1.msra.mxu0 0.0
        %669 = vmatprep.subr.mxu0 0.0
        %670 = vmatpush1.msra.mxu0 0.0
        %671 = vmatprep.subr.mxu0 0.0
        %672 = vmatpush1.msra.mxu0 0.0
        %673 = vmatprep.subr.mxu0 0.0
        %674 = vmatpush1.msra.mxu0 0.0
        %675 = vmatprep.subr.mxu0 0.0
        %676 = vmatpush1.msra.mxu0 0.0
        %677 = vmatprep.subr.mxu0 0.0
        %678 = vmatpush1.msra.mxu0 0.0
        %679 = vmatprep.subr.mxu0 0.0
        %680 = vmatpush1.msra.mxu0 0.0
        %681 = vmatprep.subr.mxu0 0.0
        %682 = vmatpush1.msra.mxu0 0.0
        %683 = vmatprep.subr.mxu0 0.0
        %684 = vmatpush1.msra.mxu0 0.0
        %685 = vmatprep.subr.mxu0 0.0
        %686 = vmatpush1.msra.mxu0 0.0
        %687 = vmatprep.subr.mxu0 0.0
        %688 = vmatpush1.msra.mxu0 0.0
        %689 = vmatprep.subr.mxu0 0.0
        %690 = vmatpush1.msra.mxu0 0.0
        %691 = vmatprep.subr.mxu0 0.0
        %692 = vmatpush1.msra.mxu0 0.0
        %693 = vmatprep.subr.mxu0 0.0
        %694 = vmatpush1.msra.mxu0 0.0
        %695 = vmatprep.mubr.f32.mxu0 0.0
        %696 = vmatmul.mubr.f32.gmra.mrb[0].mxu0 %v627
        %v697 = vpop.f32.mrb[0].mxu0
        %v698 = vadd.f32 0.0, %v697
        %v699 = vpop.f32.mrb[0].mxu0
        %700 = vmatprep.mubr.f32.mxu0 0.0
        %701 = vmatmul.mubr.f32.gmra.mrb[0].mxu0 %v629
        %v702 = vpop.f32.mrb[0].mxu0
        %v703 = vadd.f32 0.0, %v702
        %v704 = vpop.f32.mrb[0].mxu0
        %705 = vdwg.mxu0
        %v706 = vadd.f32 %v604, %v698
        %v707 = vadd.f32 %v609, %v703
        %v708 = vld [vmem:[%s4] sm:$0x1]
        %v710 = vlaneseq
        %v711 = vshrl.u32 %v710, 7
        %v712 = vsub.s32 0, %v711
        %v713 = vrot.slane %v708, %v712
        %v715 = vadd.f32 %v706, %v713
        %v716 = vadd.f32 %v707, %v713
        %v717 = vmax.f32 %v715, 0.0
        %v718 = vmax.f32 %v716, 0.0
        %v719 = vld [vmem:[%s5] sm:$0xff]
        %v720 = vld [vmem:[%s5 + $0x8] sm:$0xff]
        %v721 = vld [vmem:[%s5 + $0x10] sm:$0xff]
        %v722 = vld [vmem:[%s5 + $0x18] sm:$0xff]
        %v723 = vld [vmem:[%s5 + $0x20] sm:$0xff]
        %v724 = vld [vmem:[%s5 + $0x28] sm:$0xff]
        %v725 = vld [vmem:[%s5 + $0x30] sm:$0xff]
        %v726 = vld [vmem:[%s5 + $0x38] sm:$0xff]
        %v727 = vld [vmem:[%s5 + $0x40] sm:$0xff]
        %v728 = vld [vmem:[%s5 + $0x48] sm:$0xff]
        %v729 = vld [vmem:[%s5 + $0x50] sm:$0xff]
        %v730 = vld [vmem:[%s5 + $0x58] sm:$0xff]
        %v731 = vld [vmem:[%s5 + $0x60] sm:$0xff]
        %v732 = vld [vmem:[%s5 + $0x68] sm:$0xff]
        %v733 = vld [vmem:[%s5 + $0x70] sm:$0xff]
        %v734 = vld [vmem:[%s5 + $0x78] sm:$0xff]
        %v735 = vld [vmem:[%s6] sm:$0x3]
        %v737 = vlaneseq
        %v738 = vshrl.u32 %v737, 7
        %v739 = vsub.s32 0, %v738
        %v740 = vrot.slane %v735, %v739
        %v741 = vlaneseq
        %v742 = vshrl.u32 %v741, 7
        %v743 = vsub.s32 1, %v742
        %v744 = vrot.slane %v735, %v743
        %v748 = vsel %vm453, %v717, 0
        %v751 = vsel %vm453, %v718, 0
        %753 = vmatprep.subr.mxu0 %v720
        %754 = vmatpush1.msra.mxu0 %v719
        %755 = vmatprep.subr.mxu0 %v722
        %756 = vmatpush1.msra.mxu0 %v721
        %757 = vmatprep.subr.mxu0 %v724
        %758 = vmatpush1.msra.mxu0 %v723
        %759 = vmatprep.subr.mxu0 %v726
        %760 = vmatpush1.msra.mxu0 %v725
        %761 = vmatprep.subr.mxu0 %v728
        %762 = vmatpush1.msra.mxu0 %v727
        %763 = vmatprep.subr.mxu0 %v730
        %764 = vmatpush1.msra.mxu0 %v729
        %765 = vmatprep.subr.mxu0 %v732
        %766 = vmatpush1.msra.mxu0 %v731
        %767 = vmatprep.subr.mxu0 %v734
        %768 = vmatpush1.msra.mxu0 %v733
        %769 = vmatprep.subr.mxu0 0.0
        %770 = vmatpush1.msra.mxu0 0.0
        %771 = vmatprep.subr.mxu0 0.0
        %772 = vmatpush1.msra.mxu0 0.0
        %773 = vmatprep.subr.mxu0 0.0
        %774 = vmatpush1.msra.mxu0 0.0
        %775 = vmatprep.subr.mxu0 0.0
        %776 = vmatpush1.msra.mxu0 0.0
        %777 = vmatprep.subr.mxu0 0.0
        %778 = vmatpush1.msra.mxu0 0.0
        %779 = vmatprep.subr.mxu0 0.0
        %780 = vmatpush1.msra.mxu0 0.0
        %781 = vmatprep.subr.mxu0 0.0
        %782 = vmatpush1.msra.mxu0 0.0
        %783 = vmatprep.subr.mxu0 0.0
        %784 = vmatpush1.msra.mxu0 0.0
        %785 = vmatprep.subr.mxu0 0.0
        %786 = vmatpush1.msra.mxu0 0.0
        %787 = vmatprep.subr.mxu0 0.0
        %788 = vmatpush1.msra.mxu0 0.0
        %789 = vmatprep.subr.mxu0 0.0
        %790 = vmatpush1.msra.mxu0 0.0
        %791 = vmatprep.subr.mxu0 0.0
        %792 = vmatpush1.msra.mxu0 0.0
        %793 = vmatprep.subr.mxu0 0.0
        %794 = vmatpush1.msra.mxu0 0.0
        %795 = vmatprep.subr.mxu0 0.0
        %796 = vmatpush1.msra.mxu0 0.0
        %797 = vmatprep.subr.mxu0 0.0
        %798 = vmatpush1.msra.mxu0 0.0
        %799 = vmatprep.subr.mxu0 0.0
        %800 = vmatpush1.msra.mxu0 0.0
        %801 = vmatprep.subr.mxu0 0.0
        %802 = vmatpush1.msra.mxu0 0.0
        %803 = vmatprep.subr.mxu0 0.0
        %804 = vmatpush1.msra.mxu0 0.0
        %805 = vmatprep.subr.mxu0 0.0
        %806 = vmatpush1.msra.mxu0 0.0
        %807 = vmatprep.subr.mxu0 0.0
        %808 = vmatpush1.msra.mxu0 0.0
        %809 = vmatprep.subr.mxu0 0.0
        %810 = vmatpush1.msra.mxu0 0.0
        %811 = vmatprep.subr.mxu0 0.0
        %812 = vmatpush1.msra.mxu0 0.0
        %813 = vmatprep.subr.mxu0 0.0
        %814 = vmatpush1.msra.mxu0 0.0
        %815 = vmatprep.subr.mxu0 0.0
        %816 = vmatpush1.msra.mxu0 0.0
        %817 = vmatprep.mubr.f32.mxu0 0.0
        %818 = vmatmul.mubr.f32.gmra.mrb[0].mxu0 %v748
        %v819 = vpop.f32.mrb[0].mxu0
        %v820 = vadd.f32 %v740, %v819
        %v821 = vpop.f32.mrb[0].mxu0
        %v822 = vadd.f32 %v744, %v821
        %823 = vmatprep.mubr.f32.mxu0 0.0
        %824 = vmatmul.mubr.f32.gmra.mrb[0].mxu0 %v751
        %v825 = vpop.f32.mrb[0].mxu0
        %v826 = vadd.f32 %v740, %v825
        %v827 = vpop.f32.mrb[0].mxu0
        %v828 = vadd.f32 %v744, %v827
        %829 = vdwg.mxu0
        %v836 = vrot.slane %v277, 1
        %v837 = vrot.slane %v279, 1
        %v838 = vsel %vm447, %v836, %v837
        %v839 = vrot.slane %v278, 1
        %v840 = vrot.slane %v280, 1
        %v841 = vsel %vm447, %v839, %v840
        %v842 = vrot.slane %v281, 1
        %v843 = vsel %vm447, %v837, %v842
        %v844 = vrot.slane %v282, 1
        %v845 = vsel %vm447, %v840, %v844
        %v850 = vadd.f32 %v820, %v838
        %v851 = vadd.f32 %v822, %v841
        %v852 = vadd.f32 %v826, %v843
        %v853 = vadd.f32 %v828, %v845
        %v854 = vmax.f32 %v850, 0.0
        %v855 = vmax.f32 %v851, 0.0
        %v856 = vmax.f32 %v852, 0.0
        %v857 = vmax.f32 %v853, 0.0
        %858 = vst [vmem:[%s271] sm:$0xff] %v854
        %859 = vst [vmem:[%s271 + $0x8] sm:$0xff] %v855
        %860 = vst [vmem:[%s271 + $0x10] sm:$0xff] %v856
        %861 = vst [vmem:[%s271 + $0x18] sm:$0xff] %v857
        %s862 = sand.u32 %s181, 1
        %s863 = scalar_lea.sflag [#allocation3], %s862
        %s864 = sand.u32 %s181, 1
        %s865 = smul.addr %s864, 32
        %s866 = scalar_lea.vmem [#allocation2], %s865
        // Predicated region
        $region49: #{tpu_custom_call.1} parent=47 // pred_check
          %p867 = pneg %p191
        $region50: #{tpu_custom_call.1} parent=47 // pred_check_branch
          %869 = sbr.rel (%p867) target = $region52
        $region51: #{tpu_custom_call.1} parent=47 // pred_region
          %s871 = ssub.s32 512, 512
          %872 = vsyncadd %s863, %s871
          %s873 = smul.addr %s21, 4
          %s874 = smul.addr %s873, 128
          %s875 = scalar_lea.hbm %s7, %s874
          %s876 = sshll.u32 %s866, 4
          %s877 = int_to_ptr.vmem [resolvable:$true] %s876
          %882 = dma.vmem_to_hbm [thread:$0]  %s877, 512, %s875, %s863, 256, 256, 16
        $region52: #{tpu_custom_call.1} parent=47 // pred_fallthru
          _
      $region48: #{tpu_custom_call.1} parent=5 // pred_fallthru
        _
      %p883 = scmp.le.s32.totalorder 2, %s16
      // Predicated region
      $region53: #{tpu_custom_call.1} parent=5 // pred_check
        %p884 = pneg %p883
      $region54: #{tpu_custom_call.1} parent=5 // pred_check_branch
        %886 = sbr.rel (%p884) target = $region56
      $region55: #{tpu_custom_call.1} parent=5 // pred_region
        %s887 = ssub.s32 %s16, 2
        // Predicated region
        $region57: #{tpu_custom_call.1} parent=55 // pred_check
          %p888 = pneg %p197
        $region58: #{tpu_custom_call.1} parent=55 // pred_check_branch
          %890 = sbr.rel (%p888) target = $region60
        $region59: #{tpu_custom_call.1} parent=55 // pred_region
          %s891 = sand.u32 %s182, 1
          %s892 = scalar_lea.sflag [#allocation3], %s891
          %s893 = sand.u32 %s182, 1
          %s894 = smul.addr %s893, 32
          %s895 = scalar_lea.vmem [#allocation2], %s894
          %896 = dma.done %s892, 512
        $region60: #{tpu_custom_call.1} parent=55 // pred_fallthru
          _
      $region56: #{tpu_custom_call.1} parent=5 // pred_fallthru
        _
    $region6: #{tpu_custom_call.1} parent=1 // loop_footer
      %s20 = sadd.s32 1, %s16
    $region7: #{tpu_custom_call.1} parent=1 // loop_footer_branch
      %15 = sbr.rel target = $region3
    $region8: #{tpu_custom_call.1} parent=1 // loop_exit
      _
    %897 = vsyncpa [#allocation3], 1
    %s898 = scalar_lea.sflag [#allocation3], 1
    %899 = vsyncpa %s898, 1

</llo_original>
